<compile_context>
chip_gen: v7x
topology: tpu7x:2x2x1
jax: 0.10.0
libtpu: 0.0.40
codegen_flags: <defaults>
</compile_context>

<pallas_src>
import jax
import jax.numpy as jnp
from jax.experimental import pallas as pl
from jax.experimental.pallas import tpu as pltpu


def _round_up(n: int, m: int) -> int:
    return ((n + m - 1) // m) * m


def _round_down(n: int, m: int) -> int:
    return (n // m) * m


def _cdiv(a: int, b: int) -> int:
    return -(-a // b)


def _param_spec(shape, index_map, single_buffer: bool) -> pl.BlockSpec:
    """BlockSpec for a parameter; single VMEM buffer when its block index
    never changes across the grid (resident weights/biases)."""
    if single_buffer:
        return pl.BlockSpec(shape, index_map, pipeline_mode=pl.Buffered(1))
    return pl.BlockSpec(shape, index_map)


def _wrapped_mlp_kernel(x_ref, w1_ref, b1_ref, w2_ref, b2_ref, o_ref, acc_ref):
    """One (batch-tile, hidden-chunk) grid step of
         relu(x @ W1 + b1) @ W2 + b2
       bf16 MXU operands, f32 accumulation.  The hidden axis (j) is a
       reduction axis: partial products of the second matmul are accumulated
       into an f32 VMEM scratch and finalized on the last j step."""
    j = pl.program_id(1)

    @pl.when(j == 0)
    def _init():
        acc_ref[...] = jnp.zeros_like(acc_ref)

    # (TB, D_in_p) @ (D_in_p, TH) -> f32
    h = jnp.dot(x_ref[...], w1_ref[...], preferred_element_type=jnp.float32)
    h = jnp.maximum(h + b1_ref[...], 0.0)          # f32 bias + ReLU (VPU)
    # (TB, TH) @ (TH, D_out_p) partial contraction, accumulated in f32.
    acc_ref[...] += jnp.dot(h.astype(jnp.bfloat16), w2_ref[...],
                            preferred_element_type=jnp.float32)

    @pl.when(j == pl.num_programs(1) - 1)
    def _finalize():
        o_ref[...] = (acc_ref[...] + b2_ref[...]).astype(o_ref.dtype)


def make_wrapper_forward(w1, b1, w2, b2, *, out_dtype=None,
                         tb_max: int = 512, th_max: int | None = None,
                         vmem_budget_bytes: int = 40 * 1024 * 1024):
    """'Init' of the wrapped inner MLP: pads + casts the parameters ONCE
    (hoisted out of forward) and returns the Pallas-backed forward closure —
    the Pallas equivalent of WrapperLikeModuleMixin.forward dispatching to the
    wrapped inner module."""
    b1 = jnp.reshape(b1, (1, -1))                   # accept (D,) or (1, D)
    b2 = jnp.reshape(b2, (1, -1))
    D_in, D_hid = w1.shape
    D_out = w2.shape[1]
    out_dtype = w1.dtype if out_dtype is None else out_dtype
    out_bytes = jnp.dtype(out_dtype).itemsize

    D_in_p = _round_up(D_in, 128)
    D_out_p = _round_up(D_out, 128)
    D_hid_p0 = _round_up(D_hid, 128)

    # Hidden tile TH: keep the bf16 weights fully VMEM-resident when small
    # enough (single reduction step, single-buffered); otherwise stream them
    # in TH-wide chunks (fits v7x's 64 MiB VMEM at large model sizes).
    weight_bytes = (D_in_p * D_hid_p0 + D_hid_p0 * D_out_p) * 2
    if th_max is None:
        if weight_bytes <= 20 * 1024 * 1024:
            th_max = D_hid_p0
        else:
            th_max = max(128, _round_down(
                (16 * 1024 * 1024) // (4 * (D_in_p + D_out_p)), 128))
    TH = max(128, min(_round_up(th_max, 128), D_hid_p0))
    D_hid_p = _round_up(D_hid, TH)                  # zero-padded -> safe chunks
    n_hid = D_hid_p // TH
    resident = (n_hid == 1)                         # weight block index constant
    w_buf = 1 if resident else 2

    # Pad + cast parameters ONCE: bf16 MXU operands, f32 biases, lane dims
    # padded to multiples of 128 / TH.  (bf16 operands + f32 accumulation is
    # the intended precision path; keep f32 weights if exact f32 is required.)
    w1_p = jnp.zeros((D_in_p, D_hid_p), jnp.bfloat16).at[:D_in, :D_hid].set(
        w1.astype(jnp.bfloat16))
    b1_p = jnp.zeros((1, D_hid_p), jnp.float32).at[:, :D_hid].set(
        b1.astype(jnp.float32))
    w2_p = jnp.zeros((D_hid_p, D_out_p), jnp.bfloat16).at[:D_hid, :D_out].set(
        w2.astype(jnp.bfloat16))
    b2_p = jnp.zeros((1, D_out_p), jnp.float32).at[:, :D_out].set(
        b2.astype(jnp.float32))

    # VMEM accounting (bytes): batch-tile-independent part ...
    static_vmem = (w_buf * (D_in_p * TH + TH * D_out_p) * 2   # W1 + W2 bf16
                   + w_buf * 8 * TH * 4                       # b1 (sublane-padded)
                   + 8 * D_out_p * 4)                         # b2
    # ... and the per-batch-row part: x (2 bufs bf16) + out (2 bufs) +
    # f32 accumulator + live intermediate h (f32 + its bf16 copy).
    per_row = 2 * D_in_p * 2 + 2 * D_out_p * out_bytes + D_out_p * 4 + TH * 6

    def forward(x):
        B = x.shape[0]
        assert x.shape[1] == D_in, "feature dim mismatch with wrapped module"

        # Batch tile: VMEM-budget derived, multiple of 16 (bf16 sublanes),
        # >= 2 grid steps when B allows so the "parallel" batch axis actually
        # shards across v7x's 2 TensorCores.  No batch padding: ragged last
        # tile is masked by Pallas and the garbage rows are never read back.
        tb_fit = max(vmem_budget_bytes - static_vmem, 16 * per_row) // per_row
        TB = min(tb_max, tb_fit, _round_up(B, 16))
        if B > 16:
            TB = min(TB, _round_up(_cdiv(B, 2), 16))
        TB = _round_down(TB, 16)
        if TB == 0:
            TB = 8
        n_b = _cdiv(B, TB)

        # Pad / cast x only when actually needed.
        x_p = x.astype(jnp.bfloat16)
        if D_in_p != D_in:
            x_p = jnp.pad(x_p, ((0, 0), (0, D_in_p - D_in)))

        vmem_limit = int((static_vmem + TB * per_row) * 1.5) + (4 << 20)
        vmem_limit = max(32 << 20, min(vmem_limit, 120 << 20))

        out_p = pl.pallas_call(
            _wrapped_mlp_kernel,
            out_shape=jax.ShapeDtypeStruct((B, D_out_p), out_dtype),
            grid_spec=pltpu.PrefetchScalarGridSpec(
                num_scalar_prefetch=0,
                grid=(n_b, n_hid),
                in_specs=[
                    pl.BlockSpec((TB, D_in_p), lambda i, j: (i, 0)),     # x tile
                    _param_spec((D_in_p, TH), lambda i, j: (0, j), resident),
                    _param_spec((1, TH), lambda i, j: (0, j), resident),
                    _param_spec((TH, D_out_p), lambda i, j: (j, 0), resident),
                    _param_spec((1, D_out_p), lambda i, j: (0, 0), True),
                ],
                out_specs=pl.BlockSpec((TB, D_out_p), lambda i, j: (i, 0)),
                scratch_shapes=[pltpu.VMEM((TB, D_out_p), jnp.float32)],
            ),
            compiler_params=pltpu.CompilerParams(
                dimension_semantics=("parallel", "arbitrary"),
                vmem_limit_bytes=vmem_limit),
        )(x_p, w1_p, b1_p, w2_p, b2_p)

        return out_p[:, :D_out]            # strip lane padding (batch unpadded)

    return jax.jit(forward)


if __name__ == "__main__":
    # Small deterministic test: ragged batch (40 rows vs 16-row tiles),
    # non-128-multiple feature dims, 1-D PyTorch-style biases.
    B, D_IN, D_HID, D_OUT = 40, 32, 192, 24

    key = jax.random.PRNGKey(0)
    kx, kw1, kb1, kw2, kb2 = jax.random.split(key, 5)

    x = jax.random.normal(kx, (B, D_IN), dtype=jnp.float32)
    w1 = jax.random.normal(kw1, (D_IN, D_HID), dtype=jnp.float32) * 0.1
    b1 = jax.random.normal(kb1, (D_HID,), dtype=jnp.float32) * 0.1
    w2 = jax.random.normal(kw2, (D_HID, D_OUT), dtype=jnp.float32) * 0.1
    b2 = jax.random.normal(kb2, (D_OUT,), dtype=jnp.float32) * 0.1

    # Path 1: hidden dim streamed in 128-wide chunks -> exercises the
    # reduction grid axis, the f32 accumulator, and the ragged batch tile.
    fwd_stream = make_wrapper_forward(w1, b1, w2, b2, tb_max=16, th_max=128)
    out1 = jax.block_until_ready(fwd_stream(x))

    # Path 2: default config -> weights fully VMEM-resident, single hidden
    # step, Buffered(1) single-buffering on all parameters.
    fwd_resident = make_wrapper_forward(w1, b1, w2, b2)
    out2 = jax.block_until_ready(fwd_resident(x))

    assert out1.shape == (B, D_OUT)
    assert out2.shape == (B, D_OUT)

    # Reference with the same precision path (bf16 operands, f32 accumulation).
    h_ref = jnp.dot(x.astype(jnp.bfloat16), w1.astype(jnp.bfloat16),
                    preferred_element_type=jnp.float32) + b1[None, :]
    h_ref = jnp.maximum(h_ref, 0.0)
    ref_bf16 = jnp.dot(h_ref.astype(jnp.bfloat16), w2.astype(jnp.bfloat16),
                       preferred_element_type=jnp.float32) + b2[None, :]
    assert jnp.allclose(out1, ref_bf16, atol=2e-3, rtol=2e-3)
    assert jnp.allclose(out2, ref_bf16, atol=2e-3, rtol=2e-3)

    # Loose check against the full-f32 math to confirm forward semantics.
    ref_f32 = jnp.maximum(x @ w1 + b1[None, :], 0.0) @ w2 + b2[None, :]
    assert jnp.allclose(out1, ref_f32, atol=5e-2, rtol=5e-2)
    assert jnp.allclose(out2, ref_f32, atol=5e-2, rtol=5e-2)

    print("KERNEL_OK")
</pallas_src>

<mosaic_0001>
module attributes {stable_mosaic.version = 11 : i64} {
  func.func @_wrapped_mlp_kernel(%arg0: i32, %arg1: i32, %arg2: memref<16x128xbf16, #tpu.memory_space<vmem>>, %arg3: memref<128x128xbf16, #tpu.memory_space<vmem>>, %arg4: memref<1x128xf32, #tpu.memory_space<vmem>>, %arg5: memref<128x128xbf16, #tpu.memory_space<vmem>>, %arg6: memref<1x128xf32, #tpu.memory_space<vmem>>, %arg7: memref<16x128xf32, #tpu.memory_space<vmem>>, %arg8: memref<16x128xf32, #tpu.memory_space<vmem>>) attributes {dimension_semantics = [#tpu.dimension_semantics<parallel>, #tpu.dimension_semantics<arbitrary>], iteration_bounds = array<i64: 3, 2>, scalar_prefetch = 0 : i64, scratch_operands = 1 : i64, tpu.core_type = #tpu.core_type<tc>, window_params = [{transform_indices = @transform_0, window_bounds = array<i64: 16, 128>}, {transform_indices = @transform_1, window_bounds = array<i64: 128, 128>}, {transform_indices = @transform_2, window_bounds = array<i64: 1, 128>}, {transform_indices = @transform_3, window_bounds = array<i64: 128, 128>}, {pipeline_mode = #tpu.pipeline_mode<synchronous>, transform_indices = @transform_4, window_bounds = array<i64: 1, 128>}, {transform_indices = @transform_5, window_bounds = array<i64: 16, 128>}]} {
    %c0_i32 = arith.constant 0 : i32
    %0 = arith.cmpi eq, %arg1, %c0_i32 : i32
    %1 = arith.extui %0 : i1 to i32
    %c0_i32_0 = arith.constant 0 : i32
    %2 = arith.cmpi ne, %1, %c0_i32_0 : i32
    scf.if %2 {
      %cst_15 = arith.constant 0.000000e+00 : f32
      %20 = vector.broadcast %cst_15 : f32 to vector<16x128xf32>
      %c0_16 = arith.constant 0 : index
      %c0_17 = arith.constant 0 : index
      %21 = vector.load %arg8[%c0_16, %c0_17] : memref<16x128xf32, #tpu.memory_space<vmem>>, vector<16x128xf32>
      tpu.vector_store %arg8[%c0_16, %c0_17], %20 {strides = array<i32>} : memref<16x128xf32, #tpu.memory_space<vmem>>, vector<16x128xf32>,
    } else {
    }
    %c0 = arith.constant 0 : index
    %c0_1 = arith.constant 0 : index
    %3 = vector.load %arg2[%c0, %c0_1] : memref<16x128xbf16, #tpu.memory_space<vmem>>, vector<16x128xbf16>
    %c0_2 = arith.constant 0 : index
    %c0_3 = arith.constant 0 : index
    %4 = vector.load %arg3[%c0_2, %c0_3] : memref<128x128xbf16, #tpu.memory_space<vmem>>, vector<128x128xbf16>
    %cst = arith.constant dense<0.000000e+00> : vector<16x128xf32>
    %5 = tpu.matmul %3, %4, %cst {dimension_numbers = #tpu.dot_dimension_numbers<[1], [0], [0], [1], [0, 0, 1, 1], [], []>} : vector<16x128xbf16>, vector<128x128xbf16>, vector<16x128xf32> -> vector<16x128xf32>
    %c0_4 = arith.constant 0 : index
    %c0_5 = arith.constant 0 : index
    %6 = vector.load %arg4[%c0_4, %c0_5] : memref<1x128xf32, #tpu.memory_space<vmem>>, vector<1x128xf32>
    %7 = vector.broadcast %6 : vector<1x128xf32> to vector<16x128xf32>
    %8 = arith.addf %5, %7 : vector<16x128xf32>
    %cst_6 = arith.constant 0.000000e+00 : f32
    %9 = vector.broadcast %cst_6 : f32 to vector<16x128xf32>
    %10 = arith.maximumf %8, %9 : vector<16x128xf32>
    %c0_7 = arith.constant 0 : index
    %c0_8 = arith.constant 0 : index
    %11 = vector.load %arg8[%c0_7, %c0_8] : memref<16x128xf32, #tpu.memory_space<vmem>>, vector<16x128xf32>
    %12 = arith.truncf %10 : vector<16x128xf32> to vector<16x128xbf16>
    %c0_9 = arith.constant 0 : index
    %c0_10 = arith.constant 0 : index
    %13 = vector.load %arg5[%c0_9, %c0_10] : memref<128x128xbf16, #tpu.memory_space<vmem>>, vector<128x128xbf16>
    %cst_11 = arith.constant dense<0.000000e+00> : vector<16x128xf32>
    %14 = tpu.matmul %12, %13, %cst_11 {dimension_numbers = #tpu.dot_dimension_numbers<[1], [0], [0], [1], [0, 0, 1, 1], [], []>} : vector<16x128xbf16>, vector<128x128xbf16>, vector<16x128xf32> -> vector<16x128xf32>
    %15 = arith.addf %11, %14 : vector<16x128xf32>
    %c0_12 = arith.constant 0 : index
    %c0_13 = arith.constant 0 : index
    %16 = vector.load %arg8[%c0_12, %c0_13] : memref<16x128xf32, #tpu.memory_space<vmem>>, vector<16x128xf32>
    tpu.vector_store %arg8[%c0_12, %c0_13], %15 {strides = array<i32>} : memref<16x128xf32, #tpu.memory_space<vmem>>, vector<16x128xf32>,
    %c1_i32 = arith.constant 1 : i32
    %17 = arith.cmpi eq, %arg1, %c1_i32 : i32
    %18 = arith.extui %17 : i1 to i32
    %c0_i32_14 = arith.constant 0 : i32
    %19 = arith.cmpi ne, %18, %c0_i32_14 : i32
    scf.if %19 {
      %c0_15 = arith.constant 0 : index
      %c0_16 = arith.constant 0 : index
      %20 = vector.load %arg8[%c0_15, %c0_16] : memref<16x128xf32, #tpu.memory_space<vmem>>, vector<16x128xf32>
      %c0_17 = arith.constant 0 : index
      %c0_18 = arith.constant 0 : index
      %21 = vector.load %arg6[%c0_17, %c0_18] : memref<1x128xf32, #tpu.memory_space<vmem>>, vector<1x128xf32>
      %22 = vector.broadcast %21 : vector<1x128xf32> to vector<16x128xf32>
      %23 = arith.addf %20, %22 : vector<16x128xf32>
      %c0_19 = arith.constant 0 : index
      %c0_20 = arith.constant 0 : index
      %24 = vector.load %arg7[%c0_19, %c0_20] : memref<16x128xf32, #tpu.memory_space<vmem>>, vector<16x128xf32>
      tpu.vector_store %arg7[%c0_19, %c0_20], %23 {strides = array<i32>} : memref<16x128xf32, #tpu.memory_space<vmem>>, vector<16x128xf32>,
    } else {
    }
    return
  }
  func.func @transform_0(%arg0: i32, %arg1: i32) -> (i32, i32) {
    %c0_i32 = arith.constant 0 : i32
    %c0_i32_0 = arith.constant 0 : i32
    return %arg0, %c0_i32 : i32, i32
  }
  func.func @transform_1(%arg0: i32, %arg1: i32) -> (i32, i32) {
    %c0_i32 = arith.constant 0 : i32
    %c0_i32_0 = arith.constant 0 : i32
    return %c0_i32, %arg1 : i32, i32
  }
  func.func @transform_2(%arg0: i32, %arg1: i32) -> (i32, i32) {
    %c0_i32 = arith.constant 0 : i32
    %c0_i32_0 = arith.constant 0 : i32
    return %c0_i32, %arg1 : i32, i32
  }
  func.func @transform_3(%arg0: i32, %arg1: i32) -> (i32, i32) {
    %c0_i32 = arith.constant 0 : i32
    %c0_i32_0 = arith.constant 0 : i32
    return %arg1, %c0_i32 : i32, i32
  }
  func.func @transform_4(%arg0: i32, %arg1: i32) -> (i32, i32) {
    %c0_i32 = arith.constant 0 : i32
    %c0_i32_0 = arith.constant 0 : i32
    %c0_i32_1 = arith.constant 0 : i32
    return %c0_i32, %c0_i32_0 : i32, i32
  }
  func.func @transform_5(%arg0: i32, %arg1: i32) -> (i32, i32) {
    %c0_i32 = arith.constant 0 : i32
    %c0_i32_0 = arith.constant 0 : i32
    return %arg0, %c0_i32 : i32, i32
  }
}

</mosaic_0001>

<llo_original>
// kernel: forward.1
$region0: #{forward.1}
  #allocation0 [shape = 'u32[]', space=smem, size = 0x4, offset = 0x4, fixed_abs, tag = 'smem constant byte address 0x4 - core index']
  #allocation1 [shape = 'u32[144,128]{1,0:T(1,128)}', space=vmem, size = 0x12000, scoped, tag = 'internal scratch']
  #allocation2 [shape = 'f32[16,128]{1,0:T(8,128)}', space=vmem, size = 0x2000, scoped, tag = 'scratch operand']
  %s0 = inlined_call_operand.vmem [shape: bf16[40,128], index: 0, kind: input, shape index: {}]
  %s1 = inlined_call_operand.vmem [shape: bf16[128,256], index: 1, kind: input, shape index: {}]
  %s2 = inlined_call_operand.vmem [shape: f32[1,256], index: 2, kind: input, shape index: {}]
  %s3 = inlined_call_operand.vmem [shape: bf16[256,128], index: 3, kind: input, shape index: {}]
  %s4 = inlined_call_operand.vmem [shape: f32[1,128], index: 4, kind: input, shape index: {}]
  %s5 = inlined_call_operand.vmem [shape: f32[40,128], index: 5, kind: output, shape index: {}]
  %s6 = sld [smem:[#allocation0]]
  $region150: #{forward.1} parent=0
    _
  %s8 = ssub.s32 1, %s6
  %s9 = scalar_select 0, %s8, %s6
  $region1: #{forward.1} parent=0
    #allocation3 [shape = 'u8[65536]{0}', space=vmem, size = 0x10000, scoped, tag = 'input window, operand 1']
    #allocation4 [shape = 'u8[16384]{0}', space=vmem, size = 0x4000, scoped, tag = 'output window, operand 0']
    loop: start=0, step=1, limit=8
    $region2: #{forward.1} parent=1 // loop_pre_header
      _
    $region3: #{forward.1} parent=1 // loop_header
      %s11 = sphi 0, %s15
      %p12 = scmp.ge.s32.totalorder %s11, 8
      %s18 = sphi 0, %s30
      %s19 = sphi 0, %s26
      %s20 = sphi 0, %s18
      %s21 = sphi 0, %s19
      %s22 = sphi 0, %s20
      %s23 = sphi 0, %s21
      %s33 = sphi 0, %s35
      %s36 = sphi 0, %s33
      %s37 = sphi 0, %s36
      %s53 = sphi 0, %s37
      %s59 = sphi 0, %s61
      %s62 = sphi 0, %s59
      %s63 = sphi 0, %s62
      %s79 = sphi 0, %s63
      %s85 = sphi 0, %s87
      %s88 = sphi 0, %s85
      %s89 = sphi 0, %s88
      %s105 = sphi 0, %s89
      %s111 = sphi 0, %s113
      %s114 = sphi 0, %s111
      %s115 = sphi 0, %s114
      %s131 = sphi 0, %s115
      %s135 = sphi 0, %s135
      %s137 = sphi 0, %s135
      %s138 = sphi 0, %s137
      %s152 = sphi 0, %s138
      %s158 = sphi 0, %s160
      %s161 = sphi 0, %s158
      %s162 = sphi 0, %s161
      %s178 = sphi 0, %s162
    $region4: #{forward.1} parent=1 // loop_header_branch
      %14 = sbr.rel (%p12) target = $region8
    $region5: #{forward.1} parent=1 // loop_body
      %s16 = ssub.s32 %s11, 1
      %s17 = ssub.s32 %s11, 2
      %s24 = sadd.s32 1, %s19
      %p25 = scmp.ge.s32.totalorder %s24, 2
      %s26 = scalar_select %p25, 0, %s24
      %s27 = sadd.s32 1, %s18
      %s28 = scalar_select %p25, %s27, %s18
      %p29 = scmp.ge.s32.totalorder %s28, 3
      %s30 = scalar_select %p29, 0, %s28
      %s31 = ssub.s32 %s18, %s30
      %p32 = scmp.eq.s32.totalorder %s31, 0
      %s34 = sadd.s32 %s33, 1
      %s35 = scalar_select %p32, %s33, %s34
      %p38 = pneg %p32
      %p39 = scmp.eq.s32.totalorder %s11, 5
      %p40 = por %p38, %p39
      %p41 = scmp.ne.s32.totalorder %s33, %s36
      %p42 = scmp.eq.s32.totalorder %s11, 0
      %p43 = por %p41, %p42
      %p44 = scmp.ne.s32.totalorder %s33, %s36
      %p45 = scmp.eq.s32.totalorder %s16, 5
      %p46 = por %p44, %p45
      %p47 = scmp.ne.s32.totalorder %s36, %s37
      %p48 = scmp.eq.s32.totalorder %s16, 0
      %p49 = por %p47, %p48
      %p50 = scmp.ne.s32.totalorder %s36, %s37
      %p51 = scmp.eq.s32.totalorder %s17, 5
      %p52 = por %p50, %p51
      %p54 = scmp.ne.s32.totalorder %s37, %s53
      %p55 = scmp.eq.s32.totalorder %s17, 0
      %p56 = por %p54, %p55
      %s57 = ssub.s32 %s19, %s26
      %p58 = scmp.eq.s32.totalorder %s57, 0
      %s60 = sadd.s32 %s59, 1
      %s61 = scalar_select %p58, %s59, %s60
      %p64 = pneg %p58
      %p65 = scmp.eq.s32.totalorder %s11, 5
      %p66 = por %p64, %p65
      %p67 = scmp.ne.s32.totalorder %s59, %s62
      %p68 = scmp.eq.s32.totalorder %s11, 0
      %p69 = por %p67, %p68
      %p70 = scmp.ne.s32.totalorder %s59, %s62
      %p71 = scmp.eq.s32.totalorder %s16, 5
      %p72 = por %p70, %p71
      %p73 = scmp.ne.s32.totalorder %s62, %s63
      %p74 = scmp.eq.s32.totalorder %s16, 0
      %p75 = por %p73, %p74
      %p76 = scmp.ne.s32.totalorder %s62, %s63
      %p77 = scmp.eq.s32.totalorder %s17, 5
      %p78 = por %p76, %p77
      %p80 = scmp.ne.s32.totalorder %s63, %s79
      %p81 = scmp.eq.s32.totalorder %s17, 0
      %p82 = por %p80, %p81
      %s83 = ssub.s32 %s19, %s26
      %p84 = scmp.eq.s32.totalorder %s83, 0
      %s86 = sadd.s32 %s85, 1
      %s87 = scalar_select %p84, %s85, %s86
      %p90 = pneg %p84
      %p91 = scmp.eq.s32.totalorder %s11, 5
      %p92 = por %p90, %p91
      %p93 = scmp.ne.s32.totalorder %s85, %s88
      %p94 = scmp.eq.s32.totalorder %s11, 0
      %p95 = por %p93, %p94
      %p96 = scmp.ne.s32.totalorder %s85, %s88
      %p97 = scmp.eq.s32.totalorder %s16, 5
      %p98 = por %p96, %p97
      %p99 = scmp.ne.s32.totalorder %s88, %s89
      %p100 = scmp.eq.s32.totalorder %s16, 0
      %p101 = por %p99, %p100
      %p102 = scmp.ne.s32.totalorder %s88, %s89
      %p103 = scmp.eq.s32.totalorder %s17, 5
      %p104 = por %p102, %p103
      %p106 = scmp.ne.s32.totalorder %s89, %s105
      %p107 = scmp.eq.s32.totalorder %s17, 0
      %p108 = por %p106, %p107
      %s109 = ssub.s32 %s19, %s26
      %p110 = scmp.eq.s32.totalorder %s109, 0
      %s112 = sadd.s32 %s111, 1
      %s113 = scalar_select %p110, %s111, %s112
      %p116 = pneg %p110
      %p117 = scmp.eq.s32.totalorder %s11, 5
      %p118 = por %p116, %p117
      %p119 = scmp.ne.s32.totalorder %s111, %s114
      %p120 = scmp.eq.s32.totalorder %s11, 0
      %p121 = por %p119, %p120
      %p122 = scmp.ne.s32.totalorder %s111, %s114
      %p123 = scmp.eq.s32.totalorder %s16, 5
      %p124 = por %p122, %p123
      %p125 = scmp.ne.s32.totalorder %s114, %s115
      %p126 = scmp.eq.s32.totalorder %s16, 0
      %p127 = por %p125, %p126
      %p128 = scmp.ne.s32.totalorder %s114, %s115
      %p129 = scmp.eq.s32.totalorder %s17, 5
      %p130 = por %p128, %p129
      %p132 = scmp.ne.s32.totalorder %s115, %s131
      %p133 = scmp.eq.s32.totalorder %s17, 0
      %p134 = por %p132, %p133
      %s136 = sadd.s32 %s135, 1
      %p139 = scmp.eq.s32.totalorder %s11, 5
      %p140 = scmp.ne.s32.totalorder %s135, %s137
      %p141 = scmp.eq.s32.totalorder %s11, 0
      %p142 = por %p140, %p141
      %p143 = scmp.ne.s32.totalorder %s135, %s137
      %p144 = scmp.eq.s32.totalorder %s16, 5
      %p145 = por %p143, %p144
      %p146 = scmp.ne.s32.totalorder %s137, %s138
      %p147 = scmp.eq.s32.totalorder %s16, 0
      %p148 = por %p146, %p147
      %p149 = scmp.ne.s32.totalorder %s137, %s138
      %p150 = scmp.eq.s32.totalorder %s17, 5
      %p151 = por %p149, %p150
      %p153 = scmp.ne.s32.totalorder %s138, %s152
      %p154 = scmp.eq.s32.totalorder %s17, 0
      %p155 = por %p153, %p154
      %s156 = ssub.s32 %s18, %s30
      %p157 = scmp.eq.s32.totalorder %s156, 0
      %s159 = sadd.s32 %s158, 1
      %s160 = scalar_select %p157, %s158, %s159
      %p163 = pneg %p157
      %p164 = scmp.eq.s32.totalorder %s11, 5
      %p165 = por %p163, %p164
      %p166 = scmp.ne.s32.totalorder %s158, %s161
      %p167 = scmp.eq.s32.totalorder %s11, 0
      %p168 = por %p166, %p167
      %p169 = scmp.ne.s32.totalorder %s158, %s161
      %p170 = scmp.eq.s32.totalorder %s16, 5
      %p171 = por %p169, %p170
      %p172 = scmp.ne.s32.totalorder %s161, %s162
      %p173 = scmp.eq.s32.totalorder %s16, 0
      %p174 = por %p172, %p173
      %p175 = scmp.ne.s32.totalorder %s161, %s162
      %p176 = scmp.eq.s32.totalorder %s17, 5
      %p177 = por %p175, %p176
      %p179 = scmp.ne.s32.totalorder %s162, %s178
      %p180 = scmp.eq.s32.totalorder %s17, 0
      %p181 = por %p179, %p180
      %p182 = scmp.le.s32.totalorder 1, %s11
      %p183 = scmp.lt.s32.totalorder %s11, 7
      %p184 = pnand %p182, %p183
      %p185 = pneg %p184
      // Predicated region
      $region9: #{forward.1} parent=5 // pred_check
        _
      $region10: #{forward.1} parent=5 // pred_check_branch
        %187 = sbr.rel (%p184) target = $region12
      $region11: #{forward.1} parent=5 // pred_region
        %s188 = ssub.s32 %s11, 1
        // Predicated region
        $region13: #{forward.1} parent=11 // pred_check
          %p189 = pneg %p148
        $region14: #{forward.1} parent=11 // pred_check_branch
          %191 = sbr.rel (%p189) target = $region16
        $region15: #{forward.1} parent=11 // pred_region
          _
        $region16: #{forward.1} parent=11 // pred_fallthru
          _
      $region12: #{forward.1} parent=5 // pred_fallthru
        _
      %p192 = scmp.lt.s32.totalorder %s11, 6
      // Predicated region
      $region17: #{forward.1} parent=5 // pred_check
        %p193 = pneg %p192
      $region18: #{forward.1} parent=5 // pred_check_branch
        %195 = sbr.rel (%p193) target = $region20
      $region19: #{forward.1} parent=5 // pred_region
        // Predicated region
        $region21: #{forward.1} parent=19 // pred_check
          %p196 = pneg %p43
        $region22: #{forward.1} parent=19 // pred_check_branch
          %198 = sbr.rel (%p196) target = $region24
        $region23: #{forward.1} parent=19 // pred_region
          %s199 = smul.u32 2, %s18
          %s200 = ssub.s32 5, %s199
          %p201 = scmp.lt.s32.totalorder %s200, 2
          %s202 = scalar_select %p201, %s200, 2
          %s203 = smul.u32 64, %s202
          %p204 = scmp.lt.s32.totalorder %s199, 4
          %s205 = scalar_select %p204, %s199, 4
          %s206 = smul.addr %s205, 4
          %s207 = scalar_lea.vmem %s0, %s206
          %s208 = smul.u32 2, %s18
          %s209 = ssub.s32 5, %s208
          %p210 = scmp.lt.s32.totalorder %s209, 2
          %s211 = scalar_select %p210, %s209, 2
          %s212 = smul.u32 64, %s211
        $region24: #{forward.1} parent=19 // pred_fallthru
          _
        // Predicated region
        $region25: #{forward.1} parent=19 // pred_check
          %p213 = pneg %p69
        $region26: #{forward.1} parent=19 // pred_check_branch
          %215 = sbr.rel (%p213) target = $region28
        $region27: #{forward.1} parent=19 // pred_region
          %s216 = sand.u32 %s59, 1
          %s217 = sand.u32 %s59, 1
          %s218 = smul.addr %s217, 64
          %s219 = scalar_lea.vmem [#allocation3], %s218
          %s220 = smul.addr %s19, 4
          %s221 = scalar_lea.vmem %s1, %s220
          // Predicated region
          $region29: #{forward.1} parent=27 // pred_check
            _
          $region30: #{forward.1} parent=27 // pred_check_branch
            %223 = sbr.rel (0) target = $region32
          $region31: #{forward.1} parent=27 // pred_region
            // Predicated region
            $region33: #{forward.1} parent=31 // pred_check
              _
            $region34: #{forward.1} parent=31 // pred_check_branch
              %225 = sbr.rel target = $region36
            $region35: #{forward.1} parent=31 // pred_region
              // Predicated region
              $region48: #{forward.1} parent=35 // pred_check
                _
              $region49: #{forward.1} parent=35 // pred_check_branch
                %270 = sbr.rel (0) target = $region51
              $region50: #{forward.1} parent=35 // pred_region
                loop: start=0, step=1, limit=1
                $region52: #{forward.1} parent=50 // loop_pre_header
                  _
                $region53: #{forward.1} parent=50 // loop_header
                  %s272 = sphi 0, %s276
                  %p273 = scmp.ge.s32.totalorder %s272, 1
                  %s277 = sphi %s221, %s221
                  %s278 = sphi %s219, %s219
                $region54: #{forward.1} parent=50 // loop_header_branch
                  %275 = sbr.rel (%p273) target = $region58
                $region55: #{forward.1} parent=50 // loop_body
                  _
                $region56: #{forward.1} parent=50 // loop_footer
                  %s276 = sadd.s32 1, %s272
                $region57: #{forward.1} parent=50 // loop_footer_branch
                  %271 = sbr.rel target = $region53
                $region58: #{forward.1} parent=50 // loop_exit
                  _
                loop: start=0, step=1, limit=1
                $region59: #{forward.1} parent=50 // loop_pre_header
                  _
                $region60: #{forward.1} parent=50 // loop_header
                  %s281 = sphi 0, %s285
                  %p282 = scmp.ge.s32.totalorder %s281, 1
                  %s286 = sphi %s221, %s221
                  %s287 = sphi %s219, %s219
                $region61: #{forward.1} parent=50 // loop_header_branch
                  %284 = sbr.rel (%p282) target = $region65
                $region62: #{forward.1} parent=50 // loop_body
                  %v288 = vld [vmem:[%s286] sm:$0xf]
                  %289 = vst [vmem:[%s287] sm:$0xf] %v288
                  %v290 = vld [vmem:[%s286 + $0x8] sm:$0xf]
                  %291 = vst [vmem:[%s287 + $0x4] sm:$0xf] %v290
                  %v292 = vld [vmem:[%s286 + $0x10] sm:$0xf]
                  %293 = vst [vmem:[%s287 + $0x8] sm:$0xf] %v292
                  %v294 = vld [vmem:[%s286 + $0x18] sm:$0xf]
                  %295 = vst [vmem:[%s287 + $0xc] sm:$0xf] %v294
                  %v296 = vld [vmem:[%s286 + $0x20] sm:$0xf]
                  %297 = vst [vmem:[%s287 + $0x10] sm:$0xf] %v296
                  %v298 = vld [vmem:[%s286 + $0x28] sm:$0xf]
                  %299 = vst [vmem:[%s287 + $0x14] sm:$0xf] %v298
                  %v300 = vld [vmem:[%s286 + $0x30] sm:$0xf]
                  %301 = vst [vmem:[%s287 + $0x18] sm:$0xf] %v300
                  %v302 = vld [vmem:[%s286 + $0x38] sm:$0xf]
                  %303 = vst [vmem:[%s287 + $0x1c] sm:$0xf] %v302
                  %v304 = vld [vmem:[%s286 + $0x40] sm:$0xf]
                  %305 = vst [vmem:[%s287 + $0x20] sm:$0xf] %v304
                  %v306 = vld [vmem:[%s286 + $0x48] sm:$0xf]
                  %307 = vst [vmem:[%s287 + $0x24] sm:$0xf] %v306
                  %v308 = vld [vmem:[%s286 + $0x50] sm:$0xf]
                  %309 = vst [vmem:[%s287 + $0x28] sm:$0xf] %v308
                  %v310 = vld [vmem:[%s286 + $0x58] sm:$0xf]
                  %311 = vst [vmem:[%s287 + $0x2c] sm:$0xf] %v310
                  %v312 = vld [vmem:[%s286 + $0x60] sm:$0xf]
                  %313 = vst [vmem:[%s287 + $0x30] sm:$0xf] %v312
                  %v314 = vld [vmem:[%s286 + $0x68] sm:$0xf]
                  %315 = vst [vmem:[%s287 + $0x34] sm:$0xf] %v314
                  %v316 = vld [vmem:[%s286 + $0x70] sm:$0xf]
                  %317 = vst [vmem:[%s287 + $0x38] sm:$0xf] %v316
                  %v318 = vld [vmem:[%s286 + $0x78] sm:$0xf]
                  %319 = vst [vmem:[%s287 + $0x3c] sm:$0xf] %v318
                $region63: #{forward.1} parent=50 // loop_footer
                  %s285 = sadd.s32 1, %s281
                $region64: #{forward.1} parent=50 // loop_footer_branch
                  %280 = sbr.rel target = $region60
                $region65: #{forward.1} parent=50 // loop_exit
                  _
              $region51: #{forward.1} parent=35 // pred_fallthru
                _
            $region36: #{forward.1} parent=31 // pred_fallthru
              _
            // Predicated region
            $region37: #{forward.1} parent=31 // pred_check
              _
            $region38: #{forward.1} parent=31 // pred_check_branch
              %227 = sbr.rel (0) target = $region40
            $region39: #{forward.1} parent=31 // pred_region
              loop: start=0, step=1, limit=1
              $region41: #{forward.1} parent=39 // loop_pre_header
                _
              $region42: #{forward.1} parent=39 // loop_header
                %s230 = sphi 0, %s234
                %p231 = scmp.ge.s32.totalorder %s230, 1
                %s235 = sphi %s221, %s221
                %s236 = sphi %s219, %s219
              $region43: #{forward.1} parent=39 // loop_header_branch
                %233 = sbr.rel (%p231) target = $region47
              $region44: #{forward.1} parent=39 // loop_body
                %v237 = vld [vmem:[%s235] sm:$0xf]
                %238 = vst [vmem:[%s236] sm:$0xf] %v237
                %v239 = vld [vmem:[%s235 + $0x8] sm:$0xf]
                %240 = vst [vmem:[%s236 + $0x4] sm:$0xf] %v239
                %v241 = vld [vmem:[%s235 + $0x10] sm:$0xf]
                %242 = vst [vmem:[%s236 + $0x8] sm:$0xf] %v241
                %v243 = vld [vmem:[%s235 + $0x18] sm:$0xf]
                %244 = vst [vmem:[%s236 + $0xc] sm:$0xf] %v243
                %v245 = vld [vmem:[%s235 + $0x20] sm:$0xf]
                %246 = vst [vmem:[%s236 + $0x10] sm:$0xf] %v245
                %v247 = vld [vmem:[%s235 + $0x28] sm:$0xf]
                %248 = vst [vmem:[%s236 + $0x14] sm:$0xf] %v247
                %v249 = vld [vmem:[%s235 + $0x30] sm:$0xf]
                %250 = vst [vmem:[%s236 + $0x18] sm:$0xf] %v249
                %v251 = vld [vmem:[%s235 + $0x38] sm:$0xf]
                %252 = vst [vmem:[%s236 + $0x1c] sm:$0xf] %v251
                %v253 = vld [vmem:[%s235 + $0x40] sm:$0xf]
                %254 = vst [vmem:[%s236 + $0x20] sm:$0xf] %v253
                %v255 = vld [vmem:[%s235 + $0x48] sm:$0xf]
                %256 = vst [vmem:[%s236 + $0x24] sm:$0xf] %v255
                %v257 = vld [vmem:[%s235 + $0x50] sm:$0xf]
                %258 = vst [vmem:[%s236 + $0x28] sm:$0xf] %v257
                %v259 = vld [vmem:[%s235 + $0x58] sm:$0xf]
                %260 = vst [vmem:[%s236 + $0x2c] sm:$0xf] %v259
                %v261 = vld [vmem:[%s235 + $0x60] sm:$0xf]
                %262 = vst [vmem:[%s236 + $0x30] sm:$0xf] %v261
                %v263 = vld [vmem:[%s235 + $0x68] sm:$0xf]
                %264 = vst [vmem:[%s236 + $0x34] sm:$0xf] %v263
                %v265 = vld [vmem:[%s235 + $0x70] sm:$0xf]
                %266 = vst [vmem:[%s236 + $0x38] sm:$0xf] %v265
                %v267 = vld [vmem:[%s235 + $0x78] sm:$0xf]
                %268 = vst [vmem:[%s236 + $0x3c] sm:$0xf] %v267
              $region45: #{forward.1} parent=39 // loop_footer
                %s234 = sadd.s32 1, %s230
              $region46: #{forward.1} parent=39 // loop_footer_branch
                %229 = sbr.rel target = $region42
              $region47: #{forward.1} parent=39 // loop_exit
                _
            $region40: #{forward.1} parent=31 // pred_fallthru
              _
          $region32: #{forward.1} parent=27 // pred_fallthru
            _
          %320 = vnop
        $region28: #{forward.1} parent=19 // pred_fallthru
          _
        // Predicated region
        $region66: #{forward.1} parent=19 // pred_check
          %p321 = pneg %p95
        $region67: #{forward.1} parent=19 // pred_check_branch
          %323 = sbr.rel (%p321) target = $region69
        $region68: #{forward.1} parent=19 // pred_region
          %p324 = scmp.lt.s32.totalorder %s19, 1
          %s325 = scalar_select %p324, %s19, 1
          %s326 = scalar_lea.vmem %s2, %s325
        $region69: #{forward.1} parent=19 // pred_fallthru
          _
        // Predicated region
        $region70: #{forward.1} parent=19 // pred_check
          %p327 = pneg %p121
        $region71: #{forward.1} parent=19 // pred_check_branch
          %329 = sbr.rel (%p327) target = $region73
        $region72: #{forward.1} parent=19 // pred_region
          %s330 = smul.u32 16, %s19
          %p331 = scmp.lt.s32.totalorder %s330, 31
          %s332 = scalar_select %p331, %s330, 31
          %s333 = smul.addr %s332, 4
          %s334 = scalar_lea.vmem %s3, %s333
          %s335 = smul.u32 16, %s19
        $region73: #{forward.1} parent=19 // pred_fallthru
          _
      $region20: #{forward.1} parent=5 // pred_fallthru
        _
      %p336 = scmp.le.s32.totalorder 1, %s11
      %p337 = scmp.lt.s32.totalorder %s11, 7
      %p338 = pnand %p336, %p337
      %p339 = pneg %p338
      // Predicated region
      $region74: #{forward.1} parent=5 // pred_check
        _
      $region75: #{forward.1} parent=5 // pred_check_branch
        %341 = sbr.rel (%p338) target = $region77
      $region76: #{forward.1} parent=5 // pred_region
        %s342 = ssub.s32 %s11, 1
        %s343 = sand.u32 %s62, 1
        %s344 = sand.u32 %s62, 1
        %s345 = smul.addr %s344, 64
        %s346 = scalar_lea.vmem [#allocation3], %s345
        // Predicated region
        $region78: #{forward.1} parent=76 // pred_check
          %p347 = pneg %p75
        $region79: #{forward.1} parent=76 // pred_check_branch
          %349 = sbr.rel (%p347) target = $region81
        $region80: #{forward.1} parent=76 // pred_region
          _
        $region81: #{forward.1} parent=76 // pred_fallthru
          _
        %s350 = smul.u32 2, %s20
        %s351 = ssub.s32 5, %s350
        %p352 = scmp.lt.s32.totalorder %s351, 2
        %s353 = scalar_select %p352, %s351, 2
        %s354 = smul.u32 64, %s353
        %p355 = scmp.lt.s32.totalorder %s350, 4
        %s356 = scalar_select %p355, %s350, 4
        %s357 = smul.addr %s356, 4
        %s358 = scalar_lea.vmem %s0, %s357
        %p359 = pneg %p49
        %p360 = pneg %p46
        %s361 = sand.u32 %s62, 1
        %s362 = sand.u32 %s62, 1
        %s363 = smul.addr %s362, 64
        %s364 = scalar_lea.vmem [#allocation3], %s363
        %p365 = pneg %p75
        %p366 = pneg %p72
        %p367 = scmp.lt.s32.totalorder %s21, 1
        %s368 = scalar_select %p367, %s21, 1
        %s369 = scalar_lea.vmem %s2, %s368
        %p370 = pneg %p101
        %p371 = pneg %p98
        %s372 = smul.u32 16, %s21
        %p373 = scmp.lt.s32.totalorder %s372, 31
        %s374 = scalar_select %p373, %s372, 31
        %s375 = smul.addr %s374, 4
        %s376 = scalar_lea.vmem %s3, %s375
        %p377 = pneg %p127
        %p378 = pneg %p124
        %p379 = pneg %p148
        %p380 = pneg %p145
        %p381 = pneg %p174
        %p382 = pneg %p171
        %s383 = sand.u32 %s161, 1
        %s384 = sand.u32 %s161, 1
        %s385 = smul.addr %s384, 16
        %s386 = scalar_lea.vmem [#allocation4], %s385
        %s387 = smul.u32 2, %s20
        %s388 = ssub.s32 5, %s387
        %p389 = scmp.lt.s32.totalorder %s388, 2
        %s390 = scalar_select %p389, %s388, 2
        %s391 = smul.u32 64, %s390
        %p392 = scmp.lt.s32.totalorder %s387, 4
        %s393 = scalar_select %p392, %s387, 4
        %s394 = smul.addr %s393, 4
        %s395 = scalar_lea.vmem %s0, %s394
        %s396 = smul.u32 2, %s20
        %s397 = ssub.s32 5, %s396
        %p398 = scmp.lt.s32.totalorder %s397, 2
        %s399 = scalar_select %p398, %s397, 2
        %s400 = smul.u32 64, %s399
        %p401 = scmp.lt.s32.totalorder %s21, 1
        %s402 = scalar_select %p401, %s21, 1
        %s403 = scalar_lea.vmem %s2, %s402
        %s404 = smul.u32 16, %s21
        %p405 = scmp.lt.s32.totalorder %s404, 31
        %s406 = scalar_select %p405, %s404, 31
        %s407 = smul.addr %s406, 4
        %s408 = scalar_lea.vmem %s3, %s407
        %s409 = smul.u32 16, %s21
        %s410 = smul.u32 2, %s20
        %s411 = ssub.s32 5, %s410
        %p412 = scmp.lt.s32.totalorder %s411, 2
        %s413 = scalar_select %p412, %s411, 2
        %s414 = smul.u32 128, %s413
        %p416 = scmp.eq.s32.totalorder %s21, 0
        // Predicated region
        $region82: #{forward.1} parent=76 // pred_check
          %p417 = pneg %p416
        $region83: #{forward.1} parent=76 // pred_check_branch
          %419 = sbr.rel (%p417) target = $region85
        $region84: #{forward.1} parent=76 // pred_region
          %420 = vst [vmem:[#allocation2] sm:$0xff] 0.0
          %421 = vst [vmem:[#allocation2 + $0x8] sm:$0xff] 0.0
        $region85: #{forward.1} parent=76 // pred_fallthru
          _
        %v422 = vld [vmem:[%s395] sm:$0xf]
        %v423 = vld [vmem:[%s395 + $0x4] sm:$0xf]
        %v424 = vld [vmem:[%s346] sm:$0xf]
        %v425 = vld [vmem:[%s346 + $0x4] sm:$0xf]
        %v426 = vld [vmem:[%s346 + $0x8] sm:$0xf]
        %v427 = vld [vmem:[%s346 + $0xc] sm:$0xf]
        %v428 = vld [vmem:[%s346 + $0x10] sm:$0xf]
        %v429 = vld [vmem:[%s346 + $0x14] sm:$0xf]
        %v430 = vld [vmem:[%s346 + $0x18] sm:$0xf]
        %v431 = vld [vmem:[%s346 + $0x1c] sm:$0xf]
        %v432 = vld [vmem:[%s346 + $0x20] sm:$0xf]
        %v433 = vld [vmem:[%s346 + $0x24] sm:$0xf]
        %v434 = vld [vmem:[%s346 + $0x28] sm:$0xf]
        %v435 = vld [vmem:[%s346 + $0x2c] sm:$0xf]
        %v436 = vld [vmem:[%s346 + $0x30] sm:$0xf]
        %v437 = vld [vmem:[%s346 + $0x34] sm:$0xf]
        %v438 = vld [vmem:[%s346 + $0x38] sm:$0xf]
        %v439 = vld [vmem:[%s346 + $0x3c] sm:$0xf]
        %v440 = vld [vmem:[%s403] sm:$0x1]
        %v442 = vlaneseq
        %v443 = vshrl.u32 %v442, 7
        %v444 = vsub.s32 0, %v443
        %v445 = vrot.slane %v440, %v444
        %v449 = vunpack.c.l.b16 %v422
        %v450 = vunpack.c.l.b16 %v423
        %v451 = vpack.c.b16 %v450, %v449
        %v469 = vunpack.c.l.b16 %v424
        %v470 = vunpack.c.l.b16 %v425
        %v471 = vunpack.c.l.b16 %v426
        %v472 = vunpack.c.l.b16 %v427
        %v473 = vunpack.c.l.b16 %v428
        %v474 = vunpack.c.l.b16 %v429
        %v475 = vunpack.c.l.b16 %v430
        %v476 = vunpack.c.l.b16 %v431
        %v477 = vunpack.c.l.b16 %v432
        %v478 = vunpack.c.l.b16 %v433
        %v479 = vunpack.c.l.b16 %v434
        %v480 = vunpack.c.l.b16 %v435
        %v481 = vunpack.c.l.b16 %v436
        %v482 = vunpack.c.l.b16 %v437
        %v483 = vunpack.c.l.b16 %v438
        %v484 = vunpack.c.l.b16 %v439
        %v485 = vpack.c.b16 %v470, %v469
        %v486 = vpack.c.b16 %v472, %v471
        %v487 = vpack.c.b16 %v474, %v473
        %v488 = vpack.c.b16 %v476, %v475
        %v489 = vpack.c.b16 %v478, %v477
        %v490 = vpack.c.b16 %v480, %v479
        %v491 = vpack.c.b16 %v482, %v481
        %v492 = vpack.c.b16 %v484, %v483
        %501 = vmatprep.subr.bf16.mxu0 0
        %502 = vmatpush1.bf16.msra.mxu0 %v485
        %503 = vmatprep.subr.bf16.mxu0 0
        %504 = vmatpush1.bf16.msra.mxu0 %v486
        %505 = vmatprep.subr.bf16.mxu0 0
        %506 = vmatpush1.bf16.msra.mxu0 %v487
        %507 = vmatprep.subr.bf16.mxu0 0
        %508 = vmatpush1.bf16.msra.mxu0 %v488
        %509 = vmatprep.subr.bf16.mxu0 0
        %510 = vmatpush1.bf16.msra.mxu0 %v489
        %511 = vmatprep.subr.bf16.mxu0 0
        %512 = vmatpush1.bf16.msra.mxu0 %v490
        %513 = vmatprep.subr.bf16.mxu0 0
        %514 = vmatpush1.bf16.msra.mxu0 %v491
        %515 = vmatprep.subr.bf16.mxu0 0
        %516 = vmatpush1.bf16.msra.mxu0 %v492
        %517 = vmatprep.subr.bf16.mxu0 0
        %518 = vmatpush1.bf16.msra.mxu0 0
        %519 = vmatprep.subr.bf16.mxu0 0
        %520 = vmatpush1.bf16.msra.mxu0 0
        %521 = vmatprep.subr.bf16.mxu0 0
        %522 = vmatpush1.bf16.msra.mxu0 0
        %523 = vmatprep.subr.bf16.mxu0 0
        %524 = vmatpush1.bf16.msra.mxu0 0
        %525 = vmatprep.subr.bf16.mxu0 0
        %526 = vmatpush1.bf16.msra.mxu0 0
        %527 = vmatprep.subr.bf16.mxu0 0
        %528 = vmatpush1.bf16.msra.mxu0 0
        %529 = vmatprep.subr.bf16.mxu0 0
        %530 = vmatpush1.bf16.msra.mxu0 0
        %531 = vmatprep.subr.bf16.mxu0 0
        %532 = vmatpush1.bf16.msra.mxu0 0
        %533 = vmatprep.mubr.bf16.mxu0 0
        %534 = vmatmul.mubr.bf16.gmra.mrb[0].mxu0 %v451
        %v535 = vpop.f32.mrb[0].mxu0
        %v536 = vadd.f32 %v445, %v535
        %v537 = vpop.f32.mrb[0].mxu0
        %v538 = vpop.f32.mrb[0].mxu0
        %v539 = vadd.f32 %v445, %v538
        %v540 = vpop.f32.mrb[0].mxu0
        %541 = vdwg.mxu0
        %v542 = vmax.f32 %v536, 0.0
        %v543 = vmax.f32 %v539, 0.0
        %v544 = vld [vmem:[#allocation2] sm:$0xff]
        %v545 = vld [vmem:[#allocation2 + $0x8] sm:$0xff]
        %v546 = vpack.c.bf16 %v543, %v542
        %v547 = vld [vmem:[%s408] sm:$0xf]
        %v548 = vld [vmem:[%s408 + $0x4] sm:$0xf]
        %v549 = vld [vmem:[%s408 + $0x8] sm:$0xf]
        %v550 = vld [vmem:[%s408 + $0xc] sm:$0xf]
        %v551 = vld [vmem:[%s408 + $0x10] sm:$0xf]
        %v552 = vld [vmem:[%s408 + $0x14] sm:$0xf]
        %v553 = vld [vmem:[%s408 + $0x18] sm:$0xf]
        %v554 = vld [vmem:[%s408 + $0x1c] sm:$0xf]
        %v555 = vld [vmem:[%s408 + $0x20] sm:$0xf]
        %v556 = vld [vmem:[%s408 + $0x24] sm:$0xf]
        %v557 = vld [vmem:[%s408 + $0x28] sm:$0xf]
        %v558 = vld [vmem:[%s408 + $0x2c] sm:$0xf]
        %v559 = vld [vmem:[%s408 + $0x30] sm:$0xf]
        %v560 = vld [vmem:[%s408 + $0x34] sm:$0xf]
        %v561 = vld [vmem:[%s408 + $0x38] sm:$0xf]
        %v562 = vld [vmem:[%s408 + $0x3c] sm:$0xf]
        %v579 = vunpack.c.l.b16 %v547
        %v580 = vunpack.c.l.b16 %v548
        %v581 = vunpack.c.l.b16 %v549
        %v582 = vunpack.c.l.b16 %v550
        %v583 = vunpack.c.l.b16 %v551
        %v584 = vunpack.c.l.b16 %v552
        %v585 = vunpack.c.l.b16 %v553
        %v586 = vunpack.c.l.b16 %v554
        %v587 = vunpack.c.l.b16 %v555
        %v588 = vunpack.c.l.b16 %v556
        %v589 = vunpack.c.l.b16 %v557
        %v590 = vunpack.c.l.b16 %v558
        %v591 = vunpack.c.l.b16 %v559
        %v592 = vunpack.c.l.b16 %v560
        %v593 = vunpack.c.l.b16 %v561
        %v594 = vunpack.c.l.b16 %v562
        %v595 = vpack.c.b16 %v580, %v579
        %v596 = vpack.c.b16 %v582, %v581
        %v597 = vpack.c.b16 %v584, %v583
        %v598 = vpack.c.b16 %v586, %v585
        %v599 = vpack.c.b16 %v588, %v587
        %v600 = vpack.c.b16 %v590, %v589
        %v601 = vpack.c.b16 %v592, %v591
        %v602 = vpack.c.b16 %v594, %v593
        %611 = vmatprep.subr.bf16.mxu0 0
        %612 = vmatpush1.bf16.msra.mxu0 %v595
        %613 = vmatprep.subr.bf16.mxu0 0
        %614 = vmatpush1.bf16.msra.mxu0 %v596
        %615 = vmatprep.subr.bf16.mxu0 0
        %616 = vmatpush1.bf16.msra.mxu0 %v597
        %617 = vmatprep.subr.bf16.mxu0 0
        %618 = vmatpush1.bf16.msra.mxu0 %v598
        %619 = vmatprep.subr.bf16.mxu0 0
        %620 = vmatpush1.bf16.msra.mxu0 %v599
        %621 = vmatprep.subr.bf16.mxu0 0
        %622 = vmatpush1.bf16.msra.mxu0 %v600
        %623 = vmatprep.subr.bf16.mxu0 0
        %624 = vmatpush1.bf16.msra.mxu0 %v601
        %625 = vmatprep.subr.bf16.mxu0 0
        %626 = vmatpush1.bf16.msra.mxu0 %v602
        %627 = vmatprep.subr.bf16.mxu0 0
        %628 = vmatpush1.bf16.msra.mxu0 0
        %629 = vmatprep.subr.bf16.mxu0 0
        %630 = vmatpush1.bf16.msra.mxu0 0
        %631 = vmatprep.subr.bf16.mxu0 0
        %632 = vmatpush1.bf16.msra.mxu0 0
        %633 = vmatprep.subr.bf16.mxu0 0
        %634 = vmatpush1.bf16.msra.mxu0 0
        %635 = vmatprep.subr.bf16.mxu0 0
        %636 = vmatpush1.bf16.msra.mxu0 0
        %637 = vmatprep.subr.bf16.mxu0 0
        %638 = vmatpush1.bf16.msra.mxu0 0
        %639 = vmatprep.subr.bf16.mxu0 0
        %640 = vmatpush1.bf16.msra.mxu0 0
        %641 = vmatprep.subr.bf16.mxu0 0
        %642 = vmatpush1.bf16.msra.mxu0 0
        %643 = vmatprep.mubr.bf16.mxu0 0
        %644 = vmatmul.mubr.bf16.gmra.mrb[0].mxu0 %v546
        %v645 = vpop.f32.mrb[0].mxu0
        %v646 = vadd.f32 0.0, %v645
        %v647 = vpop.f32.mrb[0].mxu0
        %v648 = vpop.f32.mrb[0].mxu0
        %v649 = vadd.f32 0.0, %v648
        %v650 = vpop.f32.mrb[0].mxu0
        %651 = vdwg.mxu0
        %v652 = vadd.f32 %v544, %v646
        %v653 = vadd.f32 %v545, %v649
        %654 = vst [vmem:[#allocation2] sm:$0xff] %v652
        %655 = vst [vmem:[#allocation2 + $0x8] sm:$0xff] %v653
        %p656 = scmp.eq.s32.totalorder %s21, 1
        // Predicated region
        $region86: #{forward.1} parent=76 // pred_check
          %p657 = pneg %p656
        $region87: #{forward.1} parent=76 // pred_check_branch
          %659 = sbr.rel (%p657) target = $region89
        $region88: #{forward.1} parent=76 // pred_region
          %v660 = vld [vmem:[#allocation2] sm:$0xff]
          %v661 = vld [vmem:[#allocation2 + $0x8] sm:$0xff]
          %v662 = vld [vmem:[%s4] sm:$0x1]
          %v664 = vlaneseq
          %v665 = vshrl.u32 %v664, 7
          %v666 = vsub.s32 0, %v665
          %v667 = vrot.slane %v662, %v666
          %v669 = vadd.f32 %v660, %v667
          %v670 = vadd.f32 %v661, %v667
          %671 = vst [vmem:[%s386] sm:$0xff] %v669
          %672 = vst [vmem:[%s386 + $0x8] sm:$0xff] %v670
        $region89: #{forward.1} parent=76 // pred_fallthru
          _
        %s673 = sand.u32 %s161, 1
        %s674 = sand.u32 %s161, 1
        %s675 = smul.addr %s674, 16
        %s676 = scalar_lea.vmem [#allocation4], %s675
        // Predicated region
        $region90: #{forward.1} parent=76 // pred_check
          %p677 = pneg %p171
        $region91: #{forward.1} parent=76 // pred_check_branch
          %679 = sbr.rel (%p677) target = $region93
        $region92: #{forward.1} parent=76 // pred_region
          %s680 = smul.u32 2, %s20
          %s681 = ssub.s32 5, %s680
          %p682 = scmp.lt.s32.totalorder %s681, 2
          %s683 = scalar_select %p682, %s681, 2
          %s684 = smul.u32 128, %s683
          %p685 = scmp.ne.s32.totalorder 0, %s684
          %s686 = smul.addr %s680, 8
          %s687 = scalar_lea.vmem %s5, %s686
          // Predicated region
          $region94: #{forward.1} parent=92 // pred_check
            %p688 = pneg %p685
          $region95: #{forward.1} parent=92 // pred_check_branch
            %690 = sbr.rel (%p688) target = $region97
          $region96: #{forward.1} parent=92 // pred_region
            // Predicated region
            $region98: #{forward.1} parent=96 // pred_check
              _
            $region99: #{forward.1} parent=96 // pred_check_branch
              %692 = sbr.rel (0) target = $region101
            $region100: #{forward.1} parent=96 // pred_region
              // Predicated region
              $region120: #{forward.1} parent=100 // pred_check
                _
              $region121: #{forward.1} parent=100 // pred_check_branch
                %743 = sbr.rel (0) target = $region123
              $region122: #{forward.1} parent=100 // pred_region
                %s744 = sshrl.u32 %s683, 1
                // While loop
                $region124: #{forward.1} parent=122 // loop_pre_header
                  _
                $region125: #{forward.1} parent=122 // loop_header
                  %s746 = sphi 0, %s748
                  %p747 = scmp.ge.s32.totalorder %s746, %s744
                  %s751 = sphi 0, %s760
                  %s752 = sphi %s676, %s763
                  %s753 = sphi %s687, %s764
                $region126: #{forward.1} parent=122 // loop_header_branch
                  %750 = sbr.rel (%p747) target = $region130
                $region127: #{forward.1} parent=122 // loop_body
                  %v754 = vld [vmem:[%s752] sm:$0xff]
                  %755 = vst [vmem:[%s753] sm:$0xff] %v754
                  %v756 = vld [vmem:[%s752 + $0x8] sm:$0xff]
                  %757 = vst [vmem:[%s753 + $0x8] sm:$0xff] %v756
                  %s758 = sadd.s32 1, %s751
                  %p759 = scmp.ge.s32.totalorder %s758, %s744
                  %s760 = scalar_select %p759, 0, %s758
                  %s761 = smul.u32 %s760, 16
                  %s762 = smul.u32 %s760, 16
                  %s763 = scalar_lea.vmem %s676, %s761 [#allocation4]
                  %s764 = scalar_lea.vmem %s687, %s762
                $region128: #{forward.1} parent=122 // loop_footer
                  %s748 = sadd.s32 %s746, 1
                $region129: #{forward.1} parent=122 // loop_footer_branch
                  %745 = sbr.rel target = $region125
                $region130: #{forward.1} parent=122 // loop_exit
                  _
                %s765 = sshrl.u32 %s683, 1
                %s766 = sand.u32 %s683, 1
                %s767 = smul.u32 %s765, 2
                %s768 = smul.u32 8, %s767
                %s769 = scalar_lea.vmem %s676, %s768 [#allocation4]
                %s770 = smul.u32 8, %s767
                %s771 = scalar_lea.vmem %s687, %s770
                // While loop
                $region131: #{forward.1} parent=122 // loop_pre_header
                  _
                $region132: #{forward.1} parent=122 // loop_header
                  %s773 = sphi 0, %s775
                  %p774 = scmp.ge.s32.totalorder %s773, %s766
                  %s778 = sphi 0, %s785
                  %s779 = sphi %s769, %s788
                  %s780 = sphi %s771, %s789
                $region133: #{forward.1} parent=122 // loop_header_branch
                  %777 = sbr.rel (%p774) target = $region137
                $region134: #{forward.1} parent=122 // loop_body
                  %v781 = vld [vmem:[%s779] sm:$0xff]
                  %782 = vst [vmem:[%s780] sm:$0xff] %v781
                  %s783 = sadd.s32 1, %s778
                  %p784 = scmp.ge.s32.totalorder %s783, %s766
                  %s785 = scalar_select %p784, 0, %s783
                  %s786 = smul.u32 %s785, 8
                  %s787 = smul.u32 %s785, 8
                  %s788 = scalar_lea.vmem %s769, %s786 [#allocation4]
                  %s789 = scalar_lea.vmem %s771, %s787
                $region135: #{forward.1} parent=122 // loop_footer
                  %s775 = sadd.s32 %s773, 1
                $region136: #{forward.1} parent=122 // loop_footer_branch
                  %772 = sbr.rel target = $region132
                $region137: #{forward.1} parent=122 // loop_exit
                  _
              $region123: #{forward.1} parent=100 // pred_fallthru
                _
              // Predicated region
              $region138: #{forward.1} parent=100 // pred_check
                _
              $region139: #{forward.1} parent=100 // pred_check_branch
                %791 = sbr.rel target = $region141
              $region140: #{forward.1} parent=100 // pred_region
                _
              $region141: #{forward.1} parent=100 // pred_fallthru
                _
            $region101: #{forward.1} parent=96 // pred_fallthru
              _
            // Predicated region
            $region102: #{forward.1} parent=96 // pred_check
              _
            $region103: #{forward.1} parent=96 // pred_check_branch
              %694 = sbr.rel target = $region105
            $region104: #{forward.1} parent=96 // pred_region
              %s696 = sshrl.u32 %s683, 1
              // While loop
              $region106: #{forward.1} parent=104 // loop_pre_header
                _
              $region107: #{forward.1} parent=104 // loop_header
                %s698 = sphi 0, %s700
                %p699 = scmp.ge.s32.totalorder %s698, %s696
                %s703 = sphi 0, %s712
                %s704 = sphi %s676, %s715
                %s705 = sphi %s687, %s716
              $region108: #{forward.1} parent=104 // loop_header_branch
                %702 = sbr.rel (%p699) target = $region112
              $region109: #{forward.1} parent=104 // loop_body
                %v706 = vld [vmem:[%s704] sm:$0xff]
                %707 = vst [vmem:[%s705] sm:$0xff] %v706
                %v708 = vld [vmem:[%s704 + $0x8] sm:$0xff]
                %709 = vst [vmem:[%s705 + $0x8] sm:$0xff] %v708
                %s710 = sadd.s32 1, %s703
                %p711 = scmp.ge.s32.totalorder %s710, %s696
                %s712 = scalar_select %p711, 0, %s710
                %s713 = smul.u32 %s712, 16
                %s714 = smul.u32 %s712, 16
                %s715 = scalar_lea.vmem %s676, %s713 [#allocation4]
                %s716 = scalar_lea.vmem %s687, %s714
              $region110: #{forward.1} parent=104 // loop_footer
                %s700 = sadd.s32 %s698, 1
              $region111: #{forward.1} parent=104 // loop_footer_branch
                %697 = sbr.rel target = $region107
              $region112: #{forward.1} parent=104 // loop_exit
                _
              %s717 = sshrl.u32 %s683, 1
              %s718 = sand.u32 %s683, 1
              %s719 = smul.u32 %s717, 2
              %s720 = smul.u32 8, %s719
              %s721 = scalar_lea.vmem %s676, %s720 [#allocation4]
              %s722 = smul.u32 8, %s719
              %s723 = scalar_lea.vmem %s687, %s722
              // While loop
              $region113: #{forward.1} parent=104 // loop_pre_header
                _
              $region114: #{forward.1} parent=104 // loop_header
                %s725 = sphi 0, %s727
                %p726 = scmp.ge.s32.totalorder %s725, %s718
                %s730 = sphi 0, %s737
                %s731 = sphi %s721, %s740
                %s732 = sphi %s723, %s741
              $region115: #{forward.1} parent=104 // loop_header_branch
                %729 = sbr.rel (%p726) target = $region119
              $region116: #{forward.1} parent=104 // loop_body
                %v733 = vld [vmem:[%s731] sm:$0xff]
                %734 = vst [vmem:[%s732] sm:$0xff] %v733
                %s735 = sadd.s32 1, %s730
                %p736 = scmp.ge.s32.totalorder %s735, %s718
                %s737 = scalar_select %p736, 0, %s735
                %s738 = smul.u32 %s737, 8
                %s739 = smul.u32 %s737, 8
                %s740 = scalar_lea.vmem %s721, %s738 [#allocation4]
                %s741 = scalar_lea.vmem %s723, %s739
              $region117: #{forward.1} parent=104 // loop_footer
                %s727 = sadd.s32 %s725, 1
              $region118: #{forward.1} parent=104 // loop_footer_branch
                %724 = sbr.rel target = $region114
              $region119: #{forward.1} parent=104 // loop_exit
                _
            $region105: #{forward.1} parent=96 // pred_fallthru
              _
          $region97: #{forward.1} parent=92 // pred_fallthru
            _
          %792 = vnop
        $region93: #{forward.1} parent=76 // pred_fallthru
          _
      $region77: #{forward.1} parent=5 // pred_fallthru
        _
      %p793 = scmp.le.s32.totalorder 2, %s11
      // Predicated region
      $region142: #{forward.1} parent=5 // pred_check
        %p794 = pneg %p793
      $region143: #{forward.1} parent=5 // pred_check_branch
        %796 = sbr.rel (%p794) target = $region145
      $region144: #{forward.1} parent=5 // pred_region
        %s797 = ssub.s32 %s11, 2
        // Predicated region
        $region146: #{forward.1} parent=144 // pred_check
          %p798 = pneg %p177
        $region147: #{forward.1} parent=144 // pred_check_branch
          %800 = sbr.rel (%p798) target = $region149
        $region148: #{forward.1} parent=144 // pred_region
          %s801 = sand.u32 %s162, 1
          %s802 = sand.u32 %s162, 1
          %s803 = smul.addr %s802, 16
          %s804 = scalar_lea.vmem [#allocation4], %s803
        $region149: #{forward.1} parent=144 // pred_fallthru
          _
      $region145: #{forward.1} parent=5 // pred_fallthru
        _
    $region6: #{forward.1} parent=1 // loop_footer
      %s15 = sadd.s32 1, %s11
    $region7: #{forward.1} parent=1 // loop_footer_branch
      %10 = sbr.rel target = $region3
    $region8: #{forward.1} parent=1 // loop_exit
      _

</llo_original>
